<compile_context>
chip_gen: v5e
topology: v5e:2x2
jax: 0.10.0
libtpu: 0.0.40
codegen_flags: <defaults>
</compile_context>

<pallas_src>
import jax
import jax.numpy as jnp
from jax import lax
from jax.experimental import pallas as pl
from jax.experimental.pallas import tpu as pltpu

_EPS = 1e-12          # matches torch.nn.functional.normalize default eps
_MIN_TILE_N = 16384   # only split a single full-table step for megacore if each half
                      # still moves enough data to amortize ~0.35 us per-step overhead


def _cdiv(a, b):
    return -(-a // b)


def _vmem_budget_bytes():
    """Generation-aware VMEM budget: generous on 128-MiB parts (v5e/v6e),
    conservative on 64-MiB parts (v7x)."""
    try:
        info = pltpu.get_tpu_info()
        cap = int(getattr(info, "vmem_capacity_bytes", 64 * 1024 * 1024))
    except Exception:
        cap = 64 * 1024 * 1024
    if cap >= 96 * 1024 * 1024:
        return 48 * 1024 * 1024
    return 24 * 1024 * 1024


def _choose_tile_n(n_node, hidden, batch, stream_bytes, out_bytes, budget):
    """Pick a lane-aligned tile purely from the VMEM budget (no artificial cap)."""
    n128 = _cdiv(n_node, 128) * 128
    # Per table-column VMEM bytes in the (H, N) layout (lane axis = N, no padding):
    #   double-buffered emb block + double-buffered output block
    #   + f32 temporaries (emb upcast for the norm reduction, f32 score tile,
    #     per-column sumsq/inv_norm rows).
    per_col = (2 * hidden * stream_bytes   # emb double buffer
               + 2 * batch * out_bytes     # output double buffer
               + hidden * 4                # f32 upcast temp for sum-of-squares
               + batch * 4                 # f32 score temp
               + 8)                        # sumsq / inv_norm rows
    cap = max(128, (budget // per_col) // 128 * 128)
    num_steps = max(1, _cdiv(n128, cap))
    # v7x megacore: keep the 1-D "parallel" grid balanced across the two TensorCores
    # with an even step count (harmless on single-TC v5e/v6e); only split a single
    # full-table step if each half is still large enough to amortize step overhead.
    if num_steps % 2 == 1:
        if num_steps > 1:
            num_steps += 1
        elif n128 >= 2 * _MIN_TILE_N:
            num_steps = 2
    tile_n = _cdiv(_cdiv(n128, num_steps), 128) * 128
    return int(tile_n)


def prepare_item_table(weight, *, store_dtype=jnp.bfloat16):
    """One-time (weight-load time) prep of nn.Embedding weight (N, H):
    cast to the persistent streaming dtype and transpose to (H, N)."""
    return jnp.transpose(weight.astype(store_dtype))


def _make_kernel(n_valid, tile_n, has_tail):
    def kernel(fs_ref, emb_ref, out_ref):
        # fs_ref:  (B, H)   f32, L2-normalized and scaled session reps (resident)
        # emb_ref: (H, TN)  raw table tile in its storage dtype (bf16 / f32)
        # out_ref: (B, TN)  lane-dense score tile
        emb = emb_ref[...]
        e32 = emb.astype(jnp.float32)
        # 1 / max(||col||, eps) == rsqrt(max(sum(col^2), eps^2))   (sqrt monotone)
        inv_norm = lax.rsqrt(
            jnp.maximum(jnp.sum(e32 * e32, axis=0, keepdims=True), _EPS * _EPS))
        # Feed the MXU in the table's storage dtype (bf16 path: bf16 x bf16, f32 acc);
        # item-side normalization is folded into a per-output-column multiply.
        fs = fs_ref[...].astype(emb.dtype)   # tiny (B, H) cast
        scores = jnp.dot(fs, emb, preferred_element_type=jnp.float32) * inv_norm
        if has_tail:
            # Last block over-reads past N; zero those columns so no Inf/NaN from
            # garbage VMEM can ever reach HBM (they are also masked on store).
            col = (pl.program_id(0) * tile_n
                   + lax.broadcasted_iota(jnp.int32, scores.shape, 1))
            scores = jnp.where(col < n_valid, scores, 0.0)
        out_ref[...] = scores.astype(out_ref.dtype)
    return kernel


def embedding2score(final_s, emb_t, *, scale, tile_n=None, out_dtype=None):
    """final_s: (B, H) session reps; emb_t: (H, N) table from prepare_item_table.
    Returns scores of shape (B, N)."""
    B, H = final_s.shape
    H2, N = emb_t.shape
    assert H == H2, "prepared table must have shape (hidden, n_node)"
    assert jnp.issubdtype(emb_t.dtype, jnp.floating), \
        "table must be stored in a float dtype (f32 / bf16)"
    # TODO(synk): int8 (v5e/v6e) / fp8-e4m3 (v7x) table streaming with per-column
    #             scales folded into the same output multiply would cut traffic 2-4x.

    if out_dtype is None:
        out_dtype = jnp.bfloat16 if emb_t.dtype == jnp.bfloat16 else jnp.float32

    stream_bytes = jnp.dtype(emb_t.dtype).itemsize
    out_bytes = jnp.dtype(out_dtype).itemsize

    # Hoisted out of the grid loop: normalize + scale the resident session reps once.
    fs = final_s.astype(jnp.float32)
    fs = (scale * fs) * lax.rsqrt(
        jnp.maximum(jnp.sum(fs * fs, axis=-1, keepdims=True), _EPS * _EPS))

    budget = _vmem_budget_bytes()
    if tile_n is None:
        tile_n = _choose_tile_n(N, H, B, stream_bytes, out_bytes, budget)
    if tile_n >= N:
        tile_n = N     # single full-extent block is always a legal block shape
    else:
        assert tile_n % 128 == 0, "tile_n must be lane-aligned (multiple of 128)"

    grid = (_cdiv(N, tile_n),)
    has_tail = (N % tile_n) != 0
    kernel = _make_kernel(N, tile_n, has_tail)

    return pl.pallas_call(
        kernel,
        out_shape=jax.ShapeDtypeStruct((B, N), out_dtype),
        grid_spec=pltpu.PrefetchScalarGridSpec(
            num_scalar_prefetch=0,
            grid=grid,
            in_specs=[
                pl.BlockSpec((B, H), lambda j: (0, 0)),       # resident session reps
                pl.BlockSpec((H, tile_n), lambda j: (0, j)),  # streamed (K, N) tile
            ],
            out_specs=pl.BlockSpec((B, tile_n), lambda j: (0, j)),
        ),
        compiler_params=pltpu.CompilerParams(
            dimension_semantics=("parallel",),
            vmem_limit_bytes=int(budget),
        ),
        cost_estimate=pl.CostEstimate(
            flops=int(2 * B * N * H),
            transcendentals=0,
            bytes_accessed=int(H * N * stream_bytes + B * N * out_bytes + B * H * 4),
        ),
    )(fs, emb_t)


def _reference(final_s, weight, scale):
    # Pure-JAX reference mirroring the PyTorch code (weight is (N, H)).
    emb = weight.T                                               # (H, N)
    emb = emb / jnp.maximum(
        jnp.linalg.norm(emb, axis=0, keepdims=True), _EPS)       # normalize dim=0
    fs = final_s / jnp.maximum(
        jnp.linalg.norm(final_s, axis=-1, keepdims=True), _EPS)  # normalize dim=-1
    return (scale * fs) @ emb


if __name__ == "__main__":
    # Module config (synthetic): hidden_size=32, n_node=256, item_fusing=True, scale=12.0
    hidden_size = 32
    n_node = 256
    scale = 12.0
    batch = 8

    key = jax.random.PRNGKey(0)
    k_fs, k_emb = jax.random.split(key)

    # h_s / h_group are unused on the item_fusing path; build only what is needed.
    final_s = jax.random.normal(k_fs, (batch, hidden_size), dtype=jnp.float32)
    weight = jax.random.normal(k_emb, (n_node, hidden_size), dtype=jnp.float32)

    # --- f32-stored table: check against the f32 reference. ---
    emb_t_f32 = prepare_item_table(weight, store_dtype=jnp.float32)
    scores = jax.block_until_ready(
        embedding2score(final_s, emb_t_f32, scale=scale, out_dtype=jnp.float32))
    ref = _reference(final_s, weight, scale)
    assert scores.shape == (batch, n_node)
    assert jnp.allclose(scores, ref, atol=1e-2, rtol=1e-2), "f32 mismatch vs reference"

    # --- default path: persistent bf16 table, bf16 output (halved HBM traffic). ---
    emb_t_bf16 = prepare_item_table(weight)                      # one-time cast + transpose
    scores_bf16 = jax.block_until_ready(
        embedding2score(final_s, emb_t_bf16, scale=scale))
    assert scores_bf16.dtype == jnp.bfloat16
    ref_bf16 = _reference(final_s, weight.astype(jnp.bfloat16).astype(jnp.float32), scale)
    assert jnp.allclose(scores_bf16.astype(jnp.float32), ref_bf16, atol=2.5e-1, rtol=5e-2), \
        "bf16-stream mismatch vs bf16-rounded reference"

    # --- tail-handling path: N not a multiple of tile_n (masked last block). ---
    n_tail = 200
    weight_tail = jax.random.normal(jax.random.PRNGKey(1), (n_tail, hidden_size),
                                    dtype=jnp.float32)
    emb_t_tail = prepare_item_table(weight_tail, store_dtype=jnp.float32)
    scores_tail = jax.block_until_ready(
        embedding2score(final_s, emb_t_tail, scale=scale, tile_n=128,
                        out_dtype=jnp.float32))
    ref_tail = _reference(final_s, weight_tail, scale)
    assert scores_tail.shape == (batch, n_tail)
    assert jnp.allclose(scores_tail, ref_tail, atol=1e-2, rtol=1e-2), \
        "tail-block mismatch vs reference"
    assert bool(jnp.all(jnp.isfinite(scores_tail))), "non-finite values in tail output"

    print("KERNEL_OK")
</pallas_src>

<mosaic_0001>
module attributes {stable_mosaic.version = 11 : i64} {
  func.func @kernel(%arg0: i32, %arg1: memref<8x32xf32, #tpu.memory_space<vmem>>, %arg2: memref<32x256xf32, #tpu.memory_space<vmem>>, %arg3: memref<8x256xf32, #tpu.memory_space<vmem>>) attributes {dimension_semantics = [#tpu.dimension_semantics<parallel>], iteration_bounds = array<i64: 1>, scalar_prefetch = 0 : i64, scratch_operands = 0 : i64, tpu.core_type = #tpu.core_type<tc>, window_params = [{pipeline_mode = #tpu.pipeline_mode<synchronous>, transform_indices = @transform_0, window_bounds = array<i64: 8, 32>}, {transform_indices = @transform_1, window_bounds = array<i64: 32, 256>}, {transform_indices = @transform_2, window_bounds = array<i64: 8, 256>}]} {
    %c0 = arith.constant 0 : index
    %c0_0 = arith.constant 0 : index
    %0 = vector.load %arg2[%c0, %c0_0] : memref<32x256xf32, #tpu.memory_space<vmem>>, vector<32x256xf32>
    %1 = arith.mulf %0, %0 : vector<32x256xf32>
    %cst = arith.constant dense<0.000000e+00> : vector<256xf32>
    %2 = vector.multi_reduction <add>, %1, %cst [0] : vector<32x256xf32> to vector<256xf32>
    %3 = vector.shape_cast %2 : vector<256xf32> to vector<1x256xf32>
    %cst_1 = arith.constant 1.000000e-24 : f32
    %4 = vector.broadcast %cst_1 : f32 to vector<1x256xf32>
    %5 = arith.maximumf %3, %4 : vector<1x256xf32>
    %6 = math.rsqrt %5 : vector<1x256xf32>
    %c0_2 = arith.constant 0 : index
    %c0_3 = arith.constant 0 : index
    %7 = vector.load %arg1[%c0_2, %c0_3] : memref<8x32xf32, #tpu.memory_space<vmem>>, vector<8x32xf32>
    %cst_4 = arith.constant dense<0.000000e+00> : vector<8x256xf32>
    %8 = tpu.matmul %7, %0, %cst_4 {dimension_numbers = #tpu.dot_dimension_numbers<[1], [0], [0], [1], [0, 0, 1, 1], [], []>} : vector<8x32xf32>, vector<32x256xf32>, vector<8x256xf32> -> vector<8x256xf32>
    %9 = vector.broadcast %6 : vector<1x256xf32> to vector<8x256xf32>
    %10 = arith.mulf %8, %9 : vector<8x256xf32>
    %c0_5 = arith.constant 0 : index
    %c0_6 = arith.constant 0 : index
    %11 = vector.load %arg3[%c0_5, %c0_6] : memref<8x256xf32, #tpu.memory_space<vmem>>, vector<8x256xf32>
    tpu.vector_store %arg3[%c0_5, %c0_6], %10 {strides = array<i32>} : memref<8x256xf32, #tpu.memory_space<vmem>>, vector<8x256xf32>,
    return
  }
  func.func @transform_0(%arg0: i32) -> (i32, i32) {
    %c0_i32 = arith.constant 0 : i32
    %c0_i32_0 = arith.constant 0 : i32
    %c0_i32_1 = arith.constant 0 : i32
    return %c0_i32, %c0_i32_0 : i32, i32
  }
  func.func @transform_1(%arg0: i32) -> (i32, i32) {
    %c0_i32 = arith.constant 0 : i32
    %c0_i32_0 = arith.constant 0 : i32
    return %c0_i32, %arg0 : i32, i32
  }
  func.func @transform_2(%arg0: i32) -> (i32, i32) {
    %c0_i32 = arith.constant 0 : i32
    %c0_i32_0 = arith.constant 0 : i32
    return %c0_i32, %arg0 : i32, i32
  }
}

</mosaic_0001>

<llo_original>
// kernel: tpu_custom_call.1
$region0: #{tpu_custom_call.1}
  #allocation0 [shape = 'u32[]', space=smem, size = 0x4, offset = 0x4, fixed_abs, tag = 'smem constant byte address 0x4 - core index']
  #allocation1 [shape = 'u32[72,128]{1,0:T(1,128)}', space=vmem, size = 0x9000, scoped, tag = 'internal scratch']
  %s0 = inlined_call_operand.hbm [shape: f32[8,32], index: 0, kind: input, shape index: {}]
  %s1 = inlined_call_operand.hbm [shape: f32[32,256], index: 1, kind: input, shape index: {}]
  %s2 = inlined_call_operand.hbm [shape: f32[8,256], index: 2, kind: output, shape index: {}]
  %s3 = sld [smem:[#allocation0]]
  $region26: #{tpu_custom_call.1} parent=0
    _
  %s5 = ssub.s32 1, %s3
  %s6 = scalar_select 0, %s5, %s3
  $region1: #{tpu_custom_call.1} parent=0
    #allocation2 [shape = 'u8[4096]{0}', space=vmem, size = 0x1000, scoped, tag = 'input window, operand 0, single buffered']
    #allocation3 [shape = 's32[1]{0}', space=sflag, size = 0x4, scoped, tag = 'scoped memory for tpu_custom_call.1']
    #allocation4 [shape = 's32[1]{0}', space=sflag, size = 0x4, scoped, tag = 'scoped memory for tpu_custom_call.1']
    #allocation5 [shape = 'u8[32768]{0}', space=vmem, size = 0x8000, scoped, tag = 'input window, operand 1, single buffered']
    #allocation6 [shape = 's32[1]{0}', space=sflag, size = 0x4, scoped, tag = 'scoped memory for tpu_custom_call.1']
    #allocation7 [shape = 'u8[8192]{0}', space=vmem, size = 0x2000, scoped, tag = 'output window, operand 0, single buffered']
    %7 = vsyncpa [#allocation3], 0
    %8 = vsyncpa [#allocation6], 0
    %9 = vsyncpa [#allocation4], 0
    // Predicated region
    $region2: #{tpu_custom_call.1} parent=1 // pred_check
      _
    $region3: #{tpu_custom_call.1} parent=1 // pred_check_branch
      %11 = sbr.rel (0) target = $region5
    $region4: #{tpu_custom_call.1} parent=1 // pred_region
      %13 = vsyncadd [#allocation3], 0
      %s15 = sshll.u32 %s0, 4
      %s16 = int_to_ptr.hbm [resolvable:$true] %s15
      %s17 = sshll.u32 [#allocation2], 4
      %s18 = int_to_ptr.vmem [resolvable:$true] %s17
      %20 = dma.hbm_to_vmem [thread:$0]  %s16, 128, %s18, [#allocation3]
    $region5: #{tpu_custom_call.1} parent=1 // pred_fallthru
      _
    // Predicated region
    $region6: #{tpu_custom_call.1} parent=1 // pred_check
      _
    $region7: #{tpu_custom_call.1} parent=1 // pred_check_branch
      %22 = sbr.rel (0) target = $region9
    $region8: #{tpu_custom_call.1} parent=1 // pred_region
      %24 = vsyncadd [#allocation6], 0
      %s25 = sshll.u32 %s1, 4
      %s26 = int_to_ptr.hbm [resolvable:$true] %s25
      %s27 = sshll.u32 [#allocation5], 4
      %s28 = int_to_ptr.vmem [resolvable:$true] %s27
      %33 = dma.hbm_to_vmem [thread:$0]  %s26, 1024, %s28, [#allocation6], 256, 256, 16
    $region9: #{tpu_custom_call.1} parent=1 // pred_fallthru
      _
    // Predicated region
    $region10: #{tpu_custom_call.1} parent=1 // pred_check
      _
    $region11: #{tpu_custom_call.1} parent=1 // pred_check_branch
      %35 = sbr.rel (0) target = $region13
    $region12: #{tpu_custom_call.1} parent=1 // pred_region
      %37 = dma.done [#allocation3], 128
    $region13: #{tpu_custom_call.1} parent=1 // pred_fallthru
      _
    // Predicated region
    $region14: #{tpu_custom_call.1} parent=1 // pred_check
      _
    $region15: #{tpu_custom_call.1} parent=1 // pred_check_branch
      %39 = sbr.rel (0) target = $region17
    $region16: #{tpu_custom_call.1} parent=1 // pred_region
      %41 = dma.done [#allocation6], 1024
    $region17: #{tpu_custom_call.1} parent=1 // pred_fallthru
      _
    %v42 = vld [vmem:[#allocation5] sm:$0xff]
    %v43 = vld [vmem:[#allocation5 + $0x8] sm:$0xff]
    %v44 = vld [vmem:[#allocation5 + $0x10] sm:$0xff]
    %v45 = vld [vmem:[#allocation5 + $0x18] sm:$0xff]
    %v46 = vld [vmem:[#allocation5 + $0x20] sm:$0xff]
    %v47 = vld [vmem:[#allocation5 + $0x28] sm:$0xff]
    %v48 = vld [vmem:[#allocation5 + $0x30] sm:$0xff]
    %v49 = vld [vmem:[#allocation5 + $0x38] sm:$0xff]
    %v50 = vmul.f32 %v42, %v42
    %v51 = vmul.f32 %v43, %v43
    %v52 = vmul.f32 %v44, %v44
    %v53 = vmul.f32 %v45, %v45
    %v54 = vmul.f32 %v46, %v46
    %v55 = vmul.f32 %v47, %v47
    %v56 = vmul.f32 %v48, %v48
    %v57 = vmul.f32 %v49, %v49
    %v58 = vadd.f32 %v50, %v52
    %v59 = vadd.f32 %v58, %v54
    %v60 = vadd.f32 %v59, %v56
    %v61 = vrot.slane %v60, 4
    %v62 = vadd.f32 %v60, %v61
    %v63 = vrot.slane %v62, 2
    %v64 = vadd.f32 %v62, %v63
    %v65 = vrot.slane %v64, 1
    %v66 = vadd.f32 %v64, %v65
    %v67 = vadd.f32 %v51, %v53
    %v68 = vadd.f32 %v67, %v55
    %v69 = vadd.f32 %v68, %v57
    %v70 = vrot.slane %v69, 4
    %v71 = vadd.f32 %v69, %v70
    %v72 = vrot.slane %v71, 2
    %v73 = vadd.f32 %v71, %v72
    %v74 = vrot.slane %v73, 1
    %v75 = vadd.f32 %v73, %v74
    %v76 = vmax.f32 %v66, 1e-24
    %v77 = vmax.f32 %v75, 1e-24
    %v78 = vrsqrt.pop %v76
    %v79 = vmul.f32 %v78, %v76
    %v80 = vmul.f32 %v79, %v78
    %v81 = vmul.f32 0.5, %v80
    %v82 = vsub.f32 1.5, %v81
    %v83 = vmul.f32 %v78, %v82
    %vm84 = vweird.f32 %v76
    %vm85 = vweird.f32 %v78
    %vm86 = vmor %vm84, %vm85
    %v87 = vsel %vm86, %v78, %v83
    %v88 = vrsqrt.pop %v77
    %v89 = vmul.f32 %v88, %v77
    %v90 = vmul.f32 %v89, %v88
    %v91 = vmul.f32 0.5, %v90
    %v92 = vsub.f32 1.5, %v91
    %v93 = vmul.f32 %v88, %v92
    %vm94 = vweird.f32 %v77
    %vm95 = vweird.f32 %v88
    %vm96 = vmor %vm94, %vm95
    %v97 = vsel %vm96, %v88, %v93
    %v98 = vld [vmem:[#allocation2] sm:$0xff]
    %vm99 = vcmask 261120
    %v101 = vsel %vm99, %v98, 0
    %103 = vmatpush.msra.mxu0 0.0
    %104 = vmatpush.msra.mxu0 0.0
    %105 = vmatpush.msra.mxu0 0.0
    %106 = vmatpush.msra.mxu0 0.0
    %107 = vmatpush.msra.mxu0 0.0
    %108 = vmatpush.msra.mxu0 0.0
    %109 = vmatpush.msra.mxu0 0.0
    %110 = vmatpush.msra.mxu0 0.0
    %111 = vmatpush.msra.mxu0 0.0
    %112 = vmatpush.msra.mxu0 0.0
    %113 = vmatpush.msra.mxu0 0.0
    %114 = vmatpush.msra.mxu0 0.0
    %115 = vmatpush.msra.mxu0 %v48
    %116 = vmatpush.msra.mxu0 %v46
    %117 = vmatpush.msra.mxu0 %v44
    %118 = vmatpush.msra.mxu0 %v42
    %119 = vmatmul.f32.gmra.mxu0 %v101
    %v120 = vpop.f32.mrf.mxu0
    %v121 = vadd.f32 0.0, %v120
    %122 = vdwg.mxu0
    %123 = vmatpush.msra.mxu0 0.0
    %124 = vmatpush.msra.mxu0 0.0
    %125 = vmatpush.msra.mxu0 0.0
    %126 = vmatpush.msra.mxu0 0.0
    %127 = vmatpush.msra.mxu0 0.0
    %128 = vmatpush.msra.mxu0 0.0
    %129 = vmatpush.msra.mxu0 0.0
    %130 = vmatpush.msra.mxu0 0.0
    %131 = vmatpush.msra.mxu0 0.0
    %132 = vmatpush.msra.mxu0 0.0
    %133 = vmatpush.msra.mxu0 0.0
    %134 = vmatpush.msra.mxu0 0.0
    %135 = vmatpush.msra.mxu0 %v49
    %136 = vmatpush.msra.mxu0 %v47
    %137 = vmatpush.msra.mxu0 %v45
    %138 = vmatpush.msra.mxu0 %v43
    %139 = vmatmul.f32.gmra.mxu0 %v101
    %v140 = vpop.f32.mrf.mxu0
    %v141 = vadd.f32 0.0, %v140
    %142 = vdwg.mxu0
    %v143 = vmul.f32 %v121, %v87
    %v144 = vmul.f32 %v141, %v97
    %145 = vst [vmem:[#allocation7] sm:$0xff] %v143
    %146 = vst [vmem:[#allocation7 + $0x8] sm:$0xff] %v144
    // Predicated region
    $region18: #{tpu_custom_call.1} parent=1 // pred_check
      _
    $region19: #{tpu_custom_call.1} parent=1 // pred_check_branch
      %148 = sbr.rel (0) target = $region21
    $region20: #{tpu_custom_call.1} parent=1 // pred_region
      %150 = vsyncadd [#allocation4], 0
      %s152 = sshll.u32 [#allocation7], 4
      %s153 = int_to_ptr.vmem [resolvable:$true] %s152
      %s154 = sshll.u32 %s2, 4
      %s155 = int_to_ptr.hbm [resolvable:$true] %s154
      %157 = dma.vmem_to_hbm [thread:$0]  %s153, 256, %s155, [#allocation4]
    $region21: #{tpu_custom_call.1} parent=1 // pred_fallthru
      _
    // Predicated region
    $region22: #{tpu_custom_call.1} parent=1 // pred_check
      _
    $region23: #{tpu_custom_call.1} parent=1 // pred_check_branch
      %159 = sbr.rel (0) target = $region25
    $region24: #{tpu_custom_call.1} parent=1 // pred_region
      %161 = dma.done [#allocation4], 256
    $region25: #{tpu_custom_call.1} parent=1 // pred_fallthru
      _
    %162 = vsyncpa [#allocation3], 1
    %163 = vsyncpa [#allocation6], 1
    %164 = vsyncpa [#allocation4], 1

</llo_original>
